<compile_context>
chip_gen: v5e
topology: v5e:2x2
jax: 0.10.0
libtpu: 0.0.40
codegen_flags: <defaults>
</compile_context>

<pallas_src>
import jax
import jax.numpy as jnp
from jax import lax
from jax.experimental import pallas as pl
from jax.experimental.pallas import tpu as pltpu

_CHUNK = 512  # lanes per inner chunk (keeps the 5-layer chain in vregs)


def _round_up(a, m):
    return ((a + m - 1) // m) * m


def mlp_kernel(x_ref,
               w1_ref, b1_ref,
               w2_ref, b2_ref,
               w3_ref, b3_ref,
               w4_ref, b4_ref,
               wp_ref, bp_ref,
               o_ref):
    # x_ref: [tile_b, n_in] f32 (natural layout); o_ref: [n_out, tile_b] f32.
    tile_b = o_ref.shape[1]
    chunk = min(tile_b, _CHUNK)
    while tile_b % chunk:          # tile_b is a multiple of 128, so this terminates
        chunk //= 2
    n_chunks = tile_b // chunk

    # Resident weights (bf16) and biases (f32) — tiny, hoisted out of the loop.
    w1 = w1_ref[...]; b1 = b1_ref[...]
    w2 = w2_ref[...]; b2 = b2_ref[...]
    w3 = w3_ref[...]; b3 = b3_ref[...]
    w4 = w4_ref[...]; b4 = b4_ref[...]
    wp = wp_ref[...]; bp = bp_ref[...]

    # Static (trace-time) chunk loop: all slices are static, each chunk's
    # activations die at its output store, so nothing spills to VMEM.
    for c in range(n_chunks):
        off = c * chunk
        xb = x_ref[pl.ds(off, chunk), :].astype(jnp.bfloat16)       # [chunk, n_in]

        # Layer 1: contract n_in axes directly (x in natural layout).
        h = lax.dot_general(w1, xb, (((1,), (1,)), ((), ())),
                            preferred_element_type=jnp.float32)      # [H, chunk] f32
        h = jnp.maximum(h + b1, 0.0).astype(jnp.bfloat16)

        h = jnp.maximum(
            jnp.dot(w2, h, preferred_element_type=jnp.float32) + b2, 0.0
        ).astype(jnp.bfloat16)
        h = jnp.maximum(
            jnp.dot(w3, h, preferred_element_type=jnp.float32) + b3, 0.0
        ).astype(jnp.bfloat16)
        h = jnp.maximum(
            jnp.dot(w4, h, preferred_element_type=jnp.float32) + b4, 0.0
        ).astype(jnp.bfloat16)

        y = jnp.dot(wp, h, preferred_element_type=jnp.float32) + bp  # [n_out, chunk]
        o_ref[:, pl.ds(off, chunk)] = y.astype(o_ref.dtype)


def net_forward(x, params, *, tile_b=None):
    """x: [B, n_input] float32.  params: torch-oriented W* [out, in], b* [out, 1]."""
    B, n_in = x.shape
    n_hidden = params["w1"].shape[0]
    n_out = params["wp"].shape[0]

    # Tile sizing:
    #  * small B: one lane-dense 128-multiple tile, single grid step.
    #  * larger B: tiles up to 8192 lanes, but capped near ceil(B/2) so the
    #    "parallel" axis has >= 2 steps (v7x megacore sharding).
    if tile_b is None:
        if B <= 256:
            tile_b = _round_up(B, 128)
        else:
            tile_b = min(8192, _round_up(pl.cdiv(B, 2), _CHUNK))
    assert tile_b % 128 == 0, "tile_b must be a multiple of 128 (lane-dense tiles)"

    n_steps = pl.cdiv(B, tile_b)
    Bp = n_steps * tile_b

    # Pad the batch (natural [B, n_in] layout — no wrapper transpose of x).
    xp = x if Bp == B else jnp.pad(x, ((0, Bp - B), (0, 0)))

    # bf16 weights for the MXU (tiny arrays; cast cost is negligible).
    w1 = params["w1"].astype(jnp.bfloat16)
    w2 = params["w2"].astype(jnp.bfloat16)
    w3 = params["w3"].astype(jnp.bfloat16)
    w4 = params["w4"].astype(jnp.bfloat16)
    wp = params["wp"].astype(jnp.bfloat16)

    def resident(shape):
        # Whole-array block, same block every grid step -> DMA'd once.
        return pl.BlockSpec(shape, lambda i: (0, 0))

    in_specs = [
        pl.BlockSpec((tile_b, n_in), lambda i: (i, 0)),                # x tile (natural layout)
        resident((n_hidden, n_in)),     resident((n_hidden, 1)),        # hidden1
        resident((n_hidden, n_hidden)), resident((n_hidden, 1)),        # hidden2
        resident((n_hidden, n_hidden)), resident((n_hidden, 1)),        # hidden3
        resident((n_hidden, n_hidden)), resident((n_hidden, 1)),        # hidden4
        resident((n_out, n_hidden)),    resident((n_out, 1)),           # predict
    ]
    out_spec = pl.BlockSpec((n_out, tile_b), lambda i: (0, i))          # lane-dense output

    out_t = pl.pallas_call(
        mlp_kernel,
        out_shape=jax.ShapeDtypeStruct((n_out, Bp), jnp.float32),
        grid=(n_steps,),
        in_specs=in_specs,
        out_specs=out_spec,
        compiler_params=pltpu.CompilerParams(
            dimension_semantics=("parallel",),
        ),
    )(xp,
      w1, params["b1"],
      w2, params["b2"],
      w3, params["b3"],
      w4, params["b4"],
      wp, params["bp"])

    # Back to the torch [B, n_out] contract (tiny: 3 rows).
    return out_t[:, :B].T


def init_params(key, n_input, n_hidden, n_output):
    """torch.nn.Linear-style init: uniform(+/- 1/sqrt(fan_in)).
    Weights [out, in]; biases [out, 1] (broadcast over the lane/batch axis)."""
    dims = [(n_input, n_hidden), (n_hidden, n_hidden), (n_hidden, n_hidden),
            (n_hidden, n_hidden), (n_hidden, n_output)]
    names = ["1", "2", "3", "4", "p"]
    params = {}
    keys = jax.random.split(key, 2 * len(dims))
    for idx, ((fan_in, fan_out), name) in enumerate(zip(dims, names)):
        bound = 1.0 / jnp.sqrt(jnp.float32(fan_in))
        params[f"w{name}"] = jax.random.uniform(
            keys[2 * idx], (fan_out, fan_in), minval=-bound, maxval=bound,
            dtype=jnp.float32)
        params[f"b{name}"] = jax.random.uniform(
            keys[2 * idx + 1], (fan_out, 1), minval=-bound, maxval=bound,
            dtype=jnp.float32)
    return params


def net_forward_ref(x, params):
    """Pure-f32 JAX reference (exact torch semantics)."""
    h = jax.nn.relu(x @ params["w1"].T + params["b1"].T)
    h = jax.nn.relu(h @ params["w2"].T + params["b2"].T)
    h = jax.nn.relu(h @ params["w3"].T + params["b3"].T)
    h = jax.nn.relu(h @ params["w4"].T + params["b4"].T)
    return h @ params["wp"].T + params["bp"].T


def net_forward_ref_matched(x, params):
    """Reference replicating the kernel's bf16-input / f32-accumulate casting."""
    h = x.astype(jnp.bfloat16)
    for name in ("1", "2", "3", "4"):
        w = params[f"w{name}"].astype(jnp.bfloat16)
        h = jnp.dot(h, w.T, preferred_element_type=jnp.float32) + params[f"b{name}"].T
        h = jnp.maximum(h, 0.0).astype(jnp.bfloat16)
    wp = params["wp"].astype(jnp.bfloat16)
    return jnp.dot(h, wp.T, preferred_element_type=jnp.float32) + params["bp"].T


if __name__ == "__main__":
    # Lorenz-style shapes: 3 state variables in/out, small hidden width.
    n_input, n_hidden, n_output = 3, 32, 3

    key = jax.random.PRNGKey(0)
    pkey, xkey1, xkey2 = jax.random.split(key, 3)
    params = init_params(pkey, n_input, n_hidden, n_output)

    fwd = jax.jit(net_forward)

    # Case 1: small batch -> single lane-dense 128-wide tile, 1 grid step.
    x_small = jax.random.normal(xkey1, (16, n_input), dtype=jnp.float32)
    out_small = jax.block_until_ready(fwd(x_small, params))
    assert out_small.shape == (16, n_output)
    assert jnp.allclose(out_small, net_forward_ref_matched(x_small, params),
                        atol=5e-3, rtol=5e-3), "mismatch vs matched-precision ref (small)"
    assert jnp.allclose(out_small, net_forward_ref(x_small, params),
                        atol=5e-2, rtol=5e-2), "mismatch vs f32 ref (small)"

    # Case 2: larger batch -> 2 grid steps (v7x megacore), padded batch,
    # multi-chunk inner loop.
    x_big = jax.random.normal(xkey2, (2000, n_input), dtype=jnp.float32)
    out_big = jax.block_until_ready(fwd(x_big, params))
    assert out_big.shape == (2000, n_output)
    assert jnp.allclose(out_big, net_forward_ref_matched(x_big, params),
                        atol=5e-3, rtol=5e-3), "mismatch vs matched-precision ref (big)"
    assert jnp.allclose(out_big, net_forward_ref(x_big, params),
                        atol=5e-2, rtol=5e-2), "mismatch vs f32 ref (big)"

    print("KERNEL_OK")
</pallas_src>

<mosaic_0001>
module attributes {stable_mosaic.version = 11 : i64} {
  func.func @mlp_kernel(%arg0: i32, %arg1: memref<128x3xf32, #tpu.memory_space<vmem>>, %arg2: memref<32x3xbf16, #tpu.memory_space<vmem>>, %arg3: memref<32x1xf32, #tpu.memory_space<vmem>>, %arg4: memref<32x32xbf16, #tpu.memory_space<vmem>>, %arg5: memref<32x1xf32, #tpu.memory_space<vmem>>, %arg6: memref<32x32xbf16, #tpu.memory_space<vmem>>, %arg7: memref<32x1xf32, #tpu.memory_space<vmem>>, %arg8: memref<32x32xbf16, #tpu.memory_space<vmem>>, %arg9: memref<32x1xf32, #tpu.memory_space<vmem>>, %arg10: memref<3x32xbf16, #tpu.memory_space<vmem>>, %arg11: memref<3x1xf32, #tpu.memory_space<vmem>>, %arg12: memref<3x128xf32, #tpu.memory_space<vmem>>) attributes {dimension_semantics = [#tpu.dimension_semantics<parallel>], iteration_bounds = array<i64: 1>, scalar_prefetch = 0 : i64, scratch_operands = 0 : i64, tpu.core_type = #tpu.core_type<tc>, window_params = [{transform_indices = @transform_0, window_bounds = array<i64: 128, 3>}, {pipeline_mode = #tpu.pipeline_mode<synchronous>, transform_indices = @transform_1, window_bounds = array<i64: 32, 3>}, {pipeline_mode = #tpu.pipeline_mode<synchronous>, transform_indices = @transform_2, window_bounds = array<i64: 32, 1>}, {pipeline_mode = #tpu.pipeline_mode<synchronous>, transform_indices = @transform_3, window_bounds = array<i64: 32, 32>}, {pipeline_mode = #tpu.pipeline_mode<synchronous>, transform_indices = @transform_4, window_bounds = array<i64: 32, 1>}, {pipeline_mode = #tpu.pipeline_mode<synchronous>, transform_indices = @transform_5, window_bounds = array<i64: 32, 32>}, {pipeline_mode = #tpu.pipeline_mode<synchronous>, transform_indices = @transform_6, window_bounds = array<i64: 32, 1>}, {pipeline_mode = #tpu.pipeline_mode<synchronous>, transform_indices = @transform_7, window_bounds = array<i64: 32, 32>}, {pipeline_mode = #tpu.pipeline_mode<synchronous>, transform_indices = @transform_8, window_bounds = array<i64: 32, 1>}, {pipeline_mode = #tpu.pipeline_mode<synchronous>, transform_indices = @transform_9, window_bounds = array<i64: 3, 32>}, {pipeline_mode = #tpu.pipeline_mode<synchronous>, transform_indices = @transform_10, window_bounds = array<i64: 3, 1>}, {transform_indices = @transform_11, window_bounds = array<i64: 3, 128>}]} {
    %c0 = arith.constant 0 : index
    %c0_0 = arith.constant 0 : index
    %0 = vector.load %arg2[%c0, %c0_0] : memref<32x3xbf16, #tpu.memory_space<vmem>>, vector<32x3xbf16>
    %c0_1 = arith.constant 0 : index
    %c0_2 = arith.constant 0 : index
    %1 = vector.load %arg3[%c0_1, %c0_2] : memref<32x1xf32, #tpu.memory_space<vmem>>, vector<32x1xf32>
    %c0_3 = arith.constant 0 : index
    %c0_4 = arith.constant 0 : index
    %2 = vector.load %arg4[%c0_3, %c0_4] : memref<32x32xbf16, #tpu.memory_space<vmem>>, vector<32x32xbf16>
    %c0_5 = arith.constant 0 : index
    %c0_6 = arith.constant 0 : index
    %3 = vector.load %arg5[%c0_5, %c0_6] : memref<32x1xf32, #tpu.memory_space<vmem>>, vector<32x1xf32>
    %c0_7 = arith.constant 0 : index
    %c0_8 = arith.constant 0 : index
    %4 = vector.load %arg6[%c0_7, %c0_8] : memref<32x32xbf16, #tpu.memory_space<vmem>>, vector<32x32xbf16>
    %c0_9 = arith.constant 0 : index
    %c0_10 = arith.constant 0 : index
    %5 = vector.load %arg7[%c0_9, %c0_10] : memref<32x1xf32, #tpu.memory_space<vmem>>, vector<32x1xf32>
    %c0_11 = arith.constant 0 : index
    %c0_12 = arith.constant 0 : index
    %6 = vector.load %arg8[%c0_11, %c0_12] : memref<32x32xbf16, #tpu.memory_space<vmem>>, vector<32x32xbf16>
    %c0_13 = arith.constant 0 : index
    %c0_14 = arith.constant 0 : index
    %7 = vector.load %arg9[%c0_13, %c0_14] : memref<32x1xf32, #tpu.memory_space<vmem>>, vector<32x1xf32>
    %c0_15 = arith.constant 0 : index
    %c0_16 = arith.constant 0 : index
    %8 = vector.load %arg10[%c0_15, %c0_16] : memref<3x32xbf16, #tpu.memory_space<vmem>>, vector<3x32xbf16>
    %c0_17 = arith.constant 0 : index
    %c0_18 = arith.constant 0 : index
    %9 = vector.load %arg11[%c0_17, %c0_18] : memref<3x1xf32, #tpu.memory_space<vmem>>, vector<3x1xf32>
    %c0_19 = arith.constant 0 : index
    %c0_20 = arith.constant 0 : index
    %10 = vector.load %arg1[%c0_19, %c0_20] : memref<128x3xf32, #tpu.memory_space<vmem>>, vector<128x3xf32>
    %11 = arith.truncf %10 : vector<128x3xf32> to vector<128x3xbf16>
    %cst = arith.constant dense<0.000000e+00> : vector<32x128xf32>
    %12 = tpu.matmul %0, %11, %cst {dimension_numbers = #tpu.dot_dimension_numbers<[1], [1], [0], [0], [0, 0, 1, 0], [], []>} : vector<32x3xbf16>, vector<128x3xbf16>, vector<32x128xf32> -> vector<32x128xf32>
    %13 = vector.broadcast %1 : vector<32x1xf32> to vector<32x128xf32>
    %14 = arith.addf %12, %13 : vector<32x128xf32>
    %cst_21 = arith.constant 0.000000e+00 : f32
    %15 = vector.broadcast %cst_21 : f32 to vector<32x128xf32>
    %16 = arith.maximumf %14, %15 : vector<32x128xf32>
    %17 = arith.truncf %16 : vector<32x128xf32> to vector<32x128xbf16>
    %cst_22 = arith.constant dense<0.000000e+00> : vector<32x128xf32>
    %18 = tpu.matmul %2, %17, %cst_22 {dimension_numbers = #tpu.dot_dimension_numbers<[1], [0], [0], [1], [0, 0, 1, 1], [], []>} : vector<32x32xbf16>, vector<32x128xbf16>, vector<32x128xf32> -> vector<32x128xf32>
    %19 = vector.broadcast %3 : vector<32x1xf32> to vector<32x128xf32>
    %20 = arith.addf %18, %19 : vector<32x128xf32>
    %cst_23 = arith.constant 0.000000e+00 : f32
    %21 = vector.broadcast %cst_23 : f32 to vector<32x128xf32>
    %22 = arith.maximumf %20, %21 : vector<32x128xf32>
    %23 = arith.truncf %22 : vector<32x128xf32> to vector<32x128xbf16>
    %cst_24 = arith.constant dense<0.000000e+00> : vector<32x128xf32>
    %24 = tpu.matmul %4, %23, %cst_24 {dimension_numbers = #tpu.dot_dimension_numbers<[1], [0], [0], [1], [0, 0, 1, 1], [], []>} : vector<32x32xbf16>, vector<32x128xbf16>, vector<32x128xf32> -> vector<32x128xf32>
    %25 = vector.broadcast %5 : vector<32x1xf32> to vector<32x128xf32>
    %26 = arith.addf %24, %25 : vector<32x128xf32>
    %cst_25 = arith.constant 0.000000e+00 : f32
    %27 = vector.broadcast %cst_25 : f32 to vector<32x128xf32>
    %28 = arith.maximumf %26, %27 : vector<32x128xf32>
    %29 = arith.truncf %28 : vector<32x128xf32> to vector<32x128xbf16>
    %cst_26 = arith.constant dense<0.000000e+00> : vector<32x128xf32>
    %30 = tpu.matmul %6, %29, %cst_26 {dimension_numbers = #tpu.dot_dimension_numbers<[1], [0], [0], [1], [0, 0, 1, 1], [], []>} : vector<32x32xbf16>, vector<32x128xbf16>, vector<32x128xf32> -> vector<32x128xf32>
    %31 = vector.broadcast %7 : vector<32x1xf32> to vector<32x128xf32>
    %32 = arith.addf %30, %31 : vector<32x128xf32>
    %cst_27 = arith.constant 0.000000e+00 : f32
    %33 = vector.broadcast %cst_27 : f32 to vector<32x128xf32>
    %34 = arith.maximumf %32, %33 : vector<32x128xf32>
    %35 = arith.truncf %34 : vector<32x128xf32> to vector<32x128xbf16>
    %cst_28 = arith.constant dense<0.000000e+00> : vector<3x128xf32>
    %36 = tpu.matmul %8, %35, %cst_28 {dimension_numbers = #tpu.dot_dimension_numbers<[1], [0], [0], [1], [0, 0, 1, 1], [], []>} : vector<3x32xbf16>, vector<32x128xbf16>, vector<3x128xf32> -> vector<3x128xf32>
    %37 = vector.broadcast %9 : vector<3x1xf32> to vector<3x128xf32>
    %38 = arith.addf %36, %37 : vector<3x128xf32>
    %c0_29 = arith.constant 0 : index
    %c0_30 = arith.constant 0 : index
    %39 = vector.load %arg12[%c0_29, %c0_30] : memref<3x128xf32, #tpu.memory_space<vmem>>, vector<3x128xf32>
    tpu.vector_store %arg12[%c0_29, %c0_30], %38 {strides = array<i32>} : memref<3x128xf32, #tpu.memory_space<vmem>>, vector<3x128xf32>,
    return
  }
  func.func @transform_0(%arg0: i32) -> (i32, i32) {
    %c0_i32 = arith.constant 0 : i32
    %c0_i32_0 = arith.constant 0 : i32
    return %arg0, %c0_i32 : i32, i32
  }
  func.func @transform_1(%arg0: i32) -> (i32, i32) {
    %c0_i32 = arith.constant 0 : i32
    %c0_i32_0 = arith.constant 0 : i32
    %c0_i32_1 = arith.constant 0 : i32
    return %c0_i32, %c0_i32_0 : i32, i32
  }
  func.func @transform_2(%arg0: i32) -> (i32, i32) {
    %c0_i32 = arith.constant 0 : i32
    %c0_i32_0 = arith.constant 0 : i32
    %c0_i32_1 = arith.constant 0 : i32
    return %c0_i32, %c0_i32_0 : i32, i32
  }
  func.func @transform_3(%arg0: i32) -> (i32, i32) {
    %c0_i32 = arith.constant 0 : i32
    %c0_i32_0 = arith.constant 0 : i32
    %c0_i32_1 = arith.constant 0 : i32
    return %c0_i32, %c0_i32_0 : i32, i32
  }
  func.func @transform_4(%arg0: i32) -> (i32, i32) {
    %c0_i32 = arith.constant 0 : i32
    %c0_i32_0 = arith.constant 0 : i32
    %c0_i32_1 = arith.constant 0 : i32
    return %c0_i32, %c0_i32_0 : i32, i32
  }
  func.func @transform_5(%arg0: i32) -> (i32, i32) {
    %c0_i32 = arith.constant 0 : i32
    %c0_i32_0 = arith.constant 0 : i32
    %c0_i32_1 = arith.constant 0 : i32
    return %c0_i32, %c0_i32_0 : i32, i32
  }
  func.func @transform_6(%arg0: i32) -> (i32, i32) {
    %c0_i32 = arith.constant 0 : i32
    %c0_i32_0 = arith.constant 0 : i32
    %c0_i32_1 = arith.constant 0 : i32
    return %c0_i32, %c0_i32_0 : i32, i32
  }
  func.func @transform_7(%arg0: i32) -> (i32, i32) {
    %c0_i32 = arith.constant 0 : i32
    %c0_i32_0 = arith.constant 0 : i32
    %c0_i32_1 = arith.constant 0 : i32
    return %c0_i32, %c0_i32_0 : i32, i32
  }
  func.func @transform_8(%arg0: i32) -> (i32, i32) {
    %c0_i32 = arith.constant 0 : i32
    %c0_i32_0 = arith.constant 0 : i32
    %c0_i32_1 = arith.constant 0 : i32
    return %c0_i32, %c0_i32_0 : i32, i32
  }
  func.func @transform_9(%arg0: i32) -> (i32, i32) {
    %c0_i32 = arith.constant 0 : i32
    %c0_i32_0 = arith.constant 0 : i32
    %c0_i32_1 = arith.constant 0 : i32
    return %c0_i32, %c0_i32_0 : i32, i32
  }
  func.func @transform_10(%arg0: i32) -> (i32, i32) {
    %c0_i32 = arith.constant 0 : i32
    %c0_i32_0 = arith.constant 0 : i32
    %c0_i32_1 = arith.constant 0 : i32
    return %c0_i32, %c0_i32_0 : i32, i32
  }
  func.func @transform_11(%arg0: i32) -> (i32, i32) {
    %c0_i32 = arith.constant 0 : i32
    %c0_i32_0 = arith.constant 0 : i32
    return %c0_i32, %arg0 : i32, i32
  }
}

</mosaic_0001>

<llo_original>
// kernel: net_forward.1
$region0: #{net_forward.1}
  #allocation0 [shape = 'u32[]', space=smem, size = 0x4, offset = 0x4, fixed_abs, tag = 'smem constant byte address 0x4 - core index']
  #allocation1 [shape = 'u32[72,128]{1,0:T(1,128)}', space=vmem, size = 0x9000, scoped, tag = 'internal scratch']
  %s0 = inlined_call_operand.vmem [shape: f32[128,3], index: 0, kind: input, shape index: {}]
  %s1 = inlined_call_operand.vmem [shape: bf16[32,3], index: 1, kind: input, shape index: {}]
  %s2 = inlined_call_operand.vmem [shape: f32[32,1], index: 2, kind: input, shape index: {}]
  %s3 = inlined_call_operand.vmem [shape: bf16[32,32], index: 3, kind: input, shape index: {}]
  %s4 = inlined_call_operand.vmem [shape: f32[32,1], index: 4, kind: input, shape index: {}]
  %s5 = inlined_call_operand.vmem [shape: bf16[32,32], index: 5, kind: input, shape index: {}]
  %s6 = inlined_call_operand.vmem [shape: f32[32,1], index: 6, kind: input, shape index: {}]
  %s7 = inlined_call_operand.vmem [shape: bf16[32,32], index: 7, kind: input, shape index: {}]
  %s8 = inlined_call_operand.vmem [shape: f32[32,1], index: 8, kind: input, shape index: {}]
  %s9 = inlined_call_operand.vmem [shape: bf16[3,32], index: 9, kind: input, shape index: {}]
  %s10 = inlined_call_operand.vmem [shape: f32[3,1], index: 10, kind: input, shape index: {}]
  %s11 = inlined_call_operand.vmem [shape: f32[3,128], index: 11, kind: output, shape index: {}]
  %s12 = sld [smem:[#allocation0]]
  $region54: #{net_forward.1} parent=0
    _
  %s14 = ssub.s32 1, %s12
  %s15 = scalar_select 0, %s14, %s12
  // Predicated region
  $region2: #{net_forward.1} parent=0 // pred_check
    _
  $region3: #{net_forward.1} parent=0 // pred_check_branch
    %17 = sbr.rel (0) target = $region5
  $region4: #{net_forward.1} parent=0 // pred_region
    _
  $region5: #{net_forward.1} parent=0 // pred_fallthru
    _
  // Predicated region
  $region6: #{net_forward.1} parent=0 // pred_check
    _
  $region7: #{net_forward.1} parent=0 // pred_check_branch
    %19 = sbr.rel (0) target = $region9
  $region8: #{net_forward.1} parent=0 // pred_region
    _
  $region9: #{net_forward.1} parent=0 // pred_fallthru
    _
  // Predicated region
  $region10: #{net_forward.1} parent=0 // pred_check
    _
  $region11: #{net_forward.1} parent=0 // pred_check_branch
    %21 = sbr.rel (0) target = $region13
  $region12: #{net_forward.1} parent=0 // pred_region
    _
  $region13: #{net_forward.1} parent=0 // pred_fallthru
    _
  // Predicated region
  $region14: #{net_forward.1} parent=0 // pred_check
    _
  $region15: #{net_forward.1} parent=0 // pred_check_branch
    %23 = sbr.rel (0) target = $region17
  $region16: #{net_forward.1} parent=0 // pred_region
    _
  $region17: #{net_forward.1} parent=0 // pred_fallthru
    _
  // Predicated region
  $region18: #{net_forward.1} parent=0 // pred_check
    _
  $region19: #{net_forward.1} parent=0 // pred_check_branch
    %25 = sbr.rel (0) target = $region21
  $region20: #{net_forward.1} parent=0 // pred_region
    _
  $region21: #{net_forward.1} parent=0 // pred_fallthru
    _
  // Predicated region
  $region22: #{net_forward.1} parent=0 // pred_check
    _
  $region23: #{net_forward.1} parent=0 // pred_check_branch
    %27 = sbr.rel (0) target = $region25
  $region24: #{net_forward.1} parent=0 // pred_region
    _
  $region25: #{net_forward.1} parent=0 // pred_fallthru
    _
  // Predicated region
  $region26: #{net_forward.1} parent=0 // pred_check
    _
  $region27: #{net_forward.1} parent=0 // pred_check_branch
    %29 = sbr.rel (0) target = $region29
  $region28: #{net_forward.1} parent=0 // pred_region
    _
  $region29: #{net_forward.1} parent=0 // pred_fallthru
    _
  // Predicated region
  $region30: #{net_forward.1} parent=0 // pred_check
    _
  $region31: #{net_forward.1} parent=0 // pred_check_branch
    %31 = sbr.rel (0) target = $region33
  $region32: #{net_forward.1} parent=0 // pred_region
    _
  $region33: #{net_forward.1} parent=0 // pred_fallthru
    _
  // Predicated region
  $region34: #{net_forward.1} parent=0 // pred_check
    _
  $region35: #{net_forward.1} parent=0 // pred_check_branch
    %33 = sbr.rel (0) target = $region37
  $region36: #{net_forward.1} parent=0 // pred_region
    _
  $region37: #{net_forward.1} parent=0 // pred_fallthru
    _
  // Predicated region
  $region38: #{net_forward.1} parent=0 // pred_check
    _
  $region39: #{net_forward.1} parent=0 // pred_check_branch
    %35 = sbr.rel (0) target = $region41
  $region40: #{net_forward.1} parent=0 // pred_region
    _
  $region41: #{net_forward.1} parent=0 // pred_fallthru
    _
  // Predicated region
  $region42: #{net_forward.1} parent=0 // pred_check
    _
  $region43: #{net_forward.1} parent=0 // pred_check_branch
    %37 = sbr.rel (0) target = $region45
  $region44: #{net_forward.1} parent=0 // pred_region
    _
  $region45: #{net_forward.1} parent=0 // pred_fallthru
    _
  %v39 = vld [vmem:[%s1] sm:$0xf]
  %v40 = vld [vmem:[%s1 + $0x4] sm:$0xf]
  %v41 = vld [vmem:[%s1 + $0x8] sm:$0xf]
  %v42 = vld [vmem:[%s1 + $0xc] sm:$0xf]
  %v43 = vld [vmem:[%s2] sm:$0xff]
  %v44 = vld [vmem:[%s2 + $0x8] sm:$0xff]
  %v45 = vld [vmem:[%s2 + $0x10] sm:$0xff]
  %v46 = vld [vmem:[%s2 + $0x18] sm:$0xff]
  %v47 = vld [vmem:[%s3] sm:$0xf]
  %v48 = vld [vmem:[%s3 + $0x4] sm:$0xf]
  %v49 = vld [vmem:[%s3 + $0x8] sm:$0xf]
  %v50 = vld [vmem:[%s3 + $0xc] sm:$0xf]
  %v51 = vld [vmem:[%s4] sm:$0xff]
  %v52 = vld [vmem:[%s4 + $0x8] sm:$0xff]
  %v53 = vld [vmem:[%s4 + $0x10] sm:$0xff]
  %v54 = vld [vmem:[%s4 + $0x18] sm:$0xff]
  %v55 = vld [vmem:[%s5] sm:$0xf]
  %v56 = vld [vmem:[%s5 + $0x4] sm:$0xf]
  %v57 = vld [vmem:[%s5 + $0x8] sm:$0xf]
  %v58 = vld [vmem:[%s5 + $0xc] sm:$0xf]
  %v59 = vld [vmem:[%s6] sm:$0xff]
  %v60 = vld [vmem:[%s6 + $0x8] sm:$0xff]
  %v61 = vld [vmem:[%s6 + $0x10] sm:$0xff]
  %v62 = vld [vmem:[%s6 + $0x18] sm:$0xff]
  %v63 = vld [vmem:[%s7] sm:$0xf]
  %v64 = vld [vmem:[%s7 + $0x4] sm:$0xf]
  %v65 = vld [vmem:[%s7 + $0x8] sm:$0xf]
  %v66 = vld [vmem:[%s7 + $0xc] sm:$0xf]
  %v67 = vld [vmem:[%s8] sm:$0xff]
  %v68 = vld [vmem:[%s8 + $0x8] sm:$0xff]
  %v69 = vld [vmem:[%s8 + $0x10] sm:$0xff]
  %v70 = vld [vmem:[%s8 + $0x18] sm:$0xff]
  %v71 = vld [vmem:[%s9] sm:$0x3]
  %v72 = vld [vmem:[%s10] sm:$0x7]
  %v73 = vld [vmem:[%s0] sm:$0xff]
  %v74 = vld [vmem:[%s0 + $0x8] sm:$0xff]
  %v75 = vld [vmem:[%s0 + $0x10] sm:$0xff]
  %v76 = vld [vmem:[%s0 + $0x18] sm:$0xff]
  %v77 = vld [vmem:[%s0 + $0x20] sm:$0xff]
  %v78 = vld [vmem:[%s0 + $0x28] sm:$0xff]
  %v79 = vld [vmem:[%s0 + $0x30] sm:$0xff]
  %v80 = vld [vmem:[%s0 + $0x38] sm:$0xff]
  %v81 = vld [vmem:[%s0 + $0x40] sm:$0xff]
  %v82 = vld [vmem:[%s0 + $0x48] sm:$0xff]
  %v83 = vld [vmem:[%s0 + $0x50] sm:$0xff]
  %v84 = vld [vmem:[%s0 + $0x58] sm:$0xff]
  %v85 = vld [vmem:[%s0 + $0x60] sm:$0xff]
  %v86 = vld [vmem:[%s0 + $0x68] sm:$0xff]
  %v87 = vld [vmem:[%s0 + $0x70] sm:$0xff]
  %v88 = vld [vmem:[%s0 + $0x78] sm:$0xff]
  %v89 = vpack.c.bf16 %v74, %v73
  %v90 = vpack.c.bf16 %v76, %v75
  %v91 = vpack.c.bf16 %v78, %v77
  %v92 = vpack.c.bf16 %v80, %v79
  %v93 = vpack.c.bf16 %v82, %v81
  %v94 = vpack.c.bf16 %v84, %v83
  %v95 = vpack.c.bf16 %v86, %v85
  %v96 = vpack.c.bf16 %v88, %v87
  %98 = vset.pattern.permute.xlu0 0
  %99 = vperm.xlu0 %98, %v43
  %v100 = vpop.permute.xlu0 %99
  %103 = vset.pattern.permute.xlu0 0
  %104 = vperm.xlu0 %103, %v44
  %v105 = vpop.permute.xlu0 %104
  %108 = vset.pattern.permute.xlu0 0
  %109 = vperm.xlu0 %108, %v45
  %v110 = vpop.permute.xlu0 %109
  %113 = vset.pattern.permute.xlu0 0
  %114 = vperm.xlu0 %113, %v46
  %v115 = vpop.permute.xlu0 %114
  %v121 = vunpack.c.l.b16 %v39
  %v122 = vunpack.c.l.b16 %v40
  %v123 = vunpack.c.l.b16 %v41
  %v124 = vunpack.c.l.b16 %v42
  %v125 = vpack.c.b16 %v122, %v121
  %v126 = vpack.c.b16 %v124, %v123
  %vm127 = vcmask 23552
  %v129 = vsel %vm127, %v125, 0
  %v132 = vsel %vm127, %v126, 0
  %v135 = vsel %vm127, %v89, 0
  %v138 = vsel %vm127, %v90, 0
  %v141 = vsel %vm127, %v91, 0
  %v144 = vsel %vm127, %v92, 0
  %v147 = vsel %vm127, %v93, 0
  %v150 = vsel %vm127, %v94, 0
  %v153 = vsel %vm127, %v95, 0
  %v156 = vsel %vm127, %v96, 0
  %158 = vmatpush.bf16.xpose.msra.mxu0 %v156
  %159 = vmatpush.bf16.xpose.msra.mxu0 %v153
  %160 = vmatpush.bf16.xpose.msra.mxu0 %v150
  %161 = vmatpush.bf16.xpose.msra.mxu0 %v147
  %162 = vmatpush.bf16.xpose.msra.mxu0 %v144
  %163 = vmatpush.bf16.xpose.msra.mxu0 %v141
  %164 = vmatpush.bf16.xpose.msra.mxu0 %v138
  %165 = vmatpush.bf16.xpose.msra.mxu0 %v135
  %166 = vmatmul.bf16.gmra.mxu0 %v129
  %v167 = vpop.f32.mrf.mxu0
  %v168 = vadd.f32 %v100, %v167
  %v169 = vpop.f32.mrf.mxu0
  %v170 = vadd.f32 %v105, %v169
  %171 = vmatmul.bf16.gmra.mxu0 %v132
  %v172 = vpop.f32.mrf.mxu0
  %v173 = vadd.f32 %v110, %v172
  %v174 = vpop.f32.mrf.mxu0
  %v175 = vadd.f32 %v115, %v174
  %176 = vdwg.mxu0
  %v177 = vmax.f32 %v168, 0.0
  %v178 = vmax.f32 %v170, 0.0
  %v179 = vmax.f32 %v173, 0.0
  %v180 = vmax.f32 %v175, 0.0
  %v181 = vpack.c.bf16 %v178, %v177
  %v182 = vpack.c.bf16 %v180, %v179
  %184 = vset.pattern.permute.xlu0 0
  %185 = vperm.xlu0 %184, %v51
  %v186 = vpop.permute.xlu0 %185
  %189 = vset.pattern.permute.xlu0 0
  %190 = vperm.xlu0 %189, %v52
  %v191 = vpop.permute.xlu0 %190
  %194 = vset.pattern.permute.xlu0 0
  %195 = vperm.xlu0 %194, %v53
  %v196 = vpop.permute.xlu0 %195
  %199 = vset.pattern.permute.xlu0 0
  %200 = vperm.xlu0 %199, %v54
  %v201 = vpop.permute.xlu0 %200
  %v207 = vunpack.c.l.b16 %v47
  %v208 = vunpack.c.l.b16 %v48
  %v209 = vunpack.c.l.b16 %v49
  %v210 = vunpack.c.l.b16 %v50
  %v211 = vpack.c.b16 %v208, %v207
  %v212 = vpack.c.b16 %v210, %v209
  %vm213 = vcmask 261120
  %v215 = vsel %vm213, %v211, 0
  %v218 = vsel %vm213, %v212, 0
  %220 = vmatpush.bf16.msra.mxu0 0
  %221 = vmatpush.bf16.msra.mxu0 0
  %222 = vmatpush.bf16.msra.mxu0 0
  %223 = vmatpush.bf16.msra.mxu0 0
  %224 = vmatpush.bf16.msra.mxu0 0
  %225 = vmatpush.bf16.msra.mxu0 0
  %226 = vmatpush.bf16.msra.mxu0 %v182
  %227 = vmatpush.bf16.msra.mxu0 %v181
  %228 = vmatmul.bf16.gmra.mxu0 %v215
  %v229 = vpop.f32.mrf.mxu0
  %v230 = vadd.f32 %v186, %v229
  %v231 = vpop.f32.mrf.mxu0
  %v232 = vadd.f32 %v191, %v231
  %233 = vmatmul.bf16.gmra.mxu0 %v218
  %v234 = vpop.f32.mrf.mxu0
  %v235 = vadd.f32 %v196, %v234
  %v236 = vpop.f32.mrf.mxu0
  %v237 = vadd.f32 %v201, %v236
  %238 = vdwg.mxu0
  %v239 = vmax.f32 %v230, 0.0
  %v240 = vmax.f32 %v232, 0.0
  %v241 = vmax.f32 %v235, 0.0
  %v242 = vmax.f32 %v237, 0.0
  %v243 = vpack.c.bf16 %v240, %v239
  %v244 = vpack.c.bf16 %v242, %v241
  %246 = vset.pattern.permute.xlu0 0
  %247 = vperm.xlu0 %246, %v59
  %v248 = vpop.permute.xlu0 %247
  %251 = vset.pattern.permute.xlu0 0
  %252 = vperm.xlu0 %251, %v60
  %v253 = vpop.permute.xlu0 %252
  %256 = vset.pattern.permute.xlu0 0
  %257 = vperm.xlu0 %256, %v61
  %v258 = vpop.permute.xlu0 %257
  %261 = vset.pattern.permute.xlu0 0
  %262 = vperm.xlu0 %261, %v62
  %v263 = vpop.permute.xlu0 %262
  %v269 = vunpack.c.l.b16 %v55
  %v270 = vunpack.c.l.b16 %v56
  %v271 = vunpack.c.l.b16 %v57
  %v272 = vunpack.c.l.b16 %v58
  %v273 = vpack.c.b16 %v270, %v269
  %v274 = vpack.c.b16 %v272, %v271
  %v276 = vsel %vm213, %v273, 0
  %v279 = vsel %vm213, %v274, 0
  %281 = vmatpush.bf16.msra.mxu0 0
  %282 = vmatpush.bf16.msra.mxu0 0
  %283 = vmatpush.bf16.msra.mxu0 0
  %284 = vmatpush.bf16.msra.mxu0 0
  %285 = vmatpush.bf16.msra.mxu0 0
  %286 = vmatpush.bf16.msra.mxu0 0
  %287 = vmatpush.bf16.msra.mxu0 %v244
  %288 = vmatpush.bf16.msra.mxu0 %v243
  %289 = vmatmul.bf16.gmra.mxu0 %v276
  %v290 = vpop.f32.mrf.mxu0
  %v291 = vadd.f32 %v248, %v290
  %v292 = vpop.f32.mrf.mxu0
  %v293 = vadd.f32 %v253, %v292
  %294 = vmatmul.bf16.gmra.mxu0 %v279
  %v295 = vpop.f32.mrf.mxu0
  %v296 = vadd.f32 %v258, %v295
  %v297 = vpop.f32.mrf.mxu0
  %v298 = vadd.f32 %v263, %v297
  %299 = vdwg.mxu0
  %v300 = vmax.f32 %v291, 0.0
  %v301 = vmax.f32 %v293, 0.0
  %v302 = vmax.f32 %v296, 0.0
  %v303 = vmax.f32 %v298, 0.0
  %v304 = vpack.c.bf16 %v301, %v300
  %v305 = vpack.c.bf16 %v303, %v302
  %307 = vset.pattern.permute.xlu0 0
  %308 = vperm.xlu0 %307, %v67
  %v309 = vpop.permute.xlu0 %308
  %312 = vset.pattern.permute.xlu0 0
  %313 = vperm.xlu0 %312, %v68
  %v314 = vpop.permute.xlu0 %313
  %317 = vset.pattern.permute.xlu0 0
  %318 = vperm.xlu0 %317, %v69
  %v319 = vpop.permute.xlu0 %318
  %322 = vset.pattern.permute.xlu0 0
  %323 = vperm.xlu0 %322, %v70
  %v324 = vpop.permute.xlu0 %323
  %v330 = vunpack.c.l.b16 %v63
  %v331 = vunpack.c.l.b16 %v64
  %v332 = vunpack.c.l.b16 %v65
  %v333 = vunpack.c.l.b16 %v66
  %v334 = vpack.c.b16 %v331, %v330
  %v335 = vpack.c.b16 %v333, %v332
  %v337 = vsel %vm213, %v334, 0
  %v340 = vsel %vm213, %v335, 0
  %342 = vmatpush.bf16.msra.mxu0 0
  %343 = vmatpush.bf16.msra.mxu0 0
  %344 = vmatpush.bf16.msra.mxu0 0
  %345 = vmatpush.bf16.msra.mxu0 0
  %346 = vmatpush.bf16.msra.mxu0 0
  %347 = vmatpush.bf16.msra.mxu0 0
  %348 = vmatpush.bf16.msra.mxu0 %v305
  %349 = vmatpush.bf16.msra.mxu0 %v304
  %350 = vmatmul.bf16.gmra.mxu0 %v337
  %v351 = vpop.f32.mrf.mxu0
  %v352 = vadd.f32 %v309, %v351
  %v353 = vpop.f32.mrf.mxu0
  %v354 = vadd.f32 %v314, %v353
  %355 = vmatmul.bf16.gmra.mxu0 %v340
  %v356 = vpop.f32.mrf.mxu0
  %v357 = vadd.f32 %v319, %v356
  %v358 = vpop.f32.mrf.mxu0
  %v359 = vadd.f32 %v324, %v358
  %360 = vdwg.mxu0
  %v361 = vmax.f32 %v352, 0.0
  %v362 = vmax.f32 %v354, 0.0
  %v363 = vmax.f32 %v357, 0.0
  %v364 = vmax.f32 %v359, 0.0
  %v365 = vpack.c.bf16 %v362, %v361
  %v366 = vpack.c.bf16 %v364, %v363
  %368 = vset.pattern.permute.xlu0 0
  %369 = vperm.xlu0 %368, %v72
  %v370 = vpop.permute.xlu0 %369
  %v373 = vsel %vm213, %v71, 0
  %375 = vmatpush.bf16.msra.mxu0 0
  %376 = vmatpush.bf16.msra.mxu0 0
  %377 = vmatpush.bf16.msra.mxu0 0
  %378 = vmatpush.bf16.msra.mxu0 0
  %379 = vmatpush.bf16.msra.mxu0 0
  %380 = vmatpush.bf16.msra.mxu0 0
  %381 = vmatpush.bf16.msra.mxu0 %v366
  %382 = vmatpush.bf16.msra.mxu0 %v365
  %383 = vmatmul.bf16.gmra.mxu0 %v373
  %v384 = vpop.f32.mrf.mxu0
  %v385 = vadd.f32 %v370, %v384
  %v386 = vpop.f32.mrf.mxu0
  %387 = vdwg.mxu0
  %388 = vst [vmem:[%s11] sm:$0x7] %v385
  // Predicated region
  $region46: #{net_forward.1} parent=0 // pred_check
    _
  $region47: #{net_forward.1} parent=0 // pred_check_branch
    %390 = sbr.rel (0) target = $region49
  $region48: #{net_forward.1} parent=0 // pred_region
    _
  $region49: #{net_forward.1} parent=0 // pred_fallthru
    _
  // Predicated region
  $region50: #{net_forward.1} parent=0 // pred_check
    _
  $region51: #{net_forward.1} parent=0 // pred_check_branch
    %392 = sbr.rel (0) target = $region53
  $region52: #{net_forward.1} parent=0 // pred_region
    _
  $region53: #{net_forward.1} parent=0 // pred_fallthru
    _

</llo_original>
